<compile_context>
chip_gen: v7x
topology: tpu7x:2x2x1
jax: 0.10.0
libtpu: 0.0.40
codegen_flags: <defaults>
</compile_context>

<pallas_src>
import numpy as np
import jax
import jax.numpy as jnp
from jax.experimental import pallas as pl
from jax.experimental.pallas import tpu as pltpu


def _round_up(x, m):
    return ((x + m - 1) // m) * m


def _cdiv(a, b):
    return (a + b - 1) // b


def _build_relative_position_index(window_size):
    """Mirror of the PyTorch __init__ buffer construction (numpy, int32)."""
    Wh, Ww = window_size
    num_relative_distance = (2 * Wh - 1) * (2 * Ww - 1) + 3

    coords_h = np.arange(Wh)
    coords_w = np.arange(Ww)
    coords = np.stack(np.meshgrid(coords_h, coords_w, indexing="ij"))         # (2, Wh, Ww)
    coords_flatten = coords.reshape(2, -1)                                     # (2, Wh*Ww)
    relative_coords = coords_flatten[:, :, None] - coords_flatten[:, None, :]  # (2, N, N)
    relative_coords = relative_coords.transpose(1, 2, 0).copy()                # (N, N, 2)
    relative_coords[:, :, 0] += Wh - 1
    relative_coords[:, :, 1] += Ww - 1
    relative_coords[:, :, 0] *= 2 * Ww - 1

    L = Wh * Ww + 1
    relative_position_index = np.zeros((L, L), dtype=np.int64)
    relative_position_index[1:, 1:] = relative_coords.sum(-1)
    relative_position_index[0, 0:] = num_relative_distance - 3
    relative_position_index[0:, 0] = num_relative_distance - 2
    relative_position_index[0, 0] = num_relative_distance - 1
    return relative_position_index.astype(np.int32), num_relative_distance


def _gather_bias_kernel(idx_ref, table_t_ref, out_ref):
    """out[h, k] = table_t[h, idx[0, k]]  via  table_t @ onehot  on the MXU.

    idx_ref     : (1, blk)         int32   (lane-dense flat indices)
    table_t_ref : (H_pad, R_pad)   float32 (pre-transposed, zero-padded table; resident)
    out_ref     : (H_pad, blk)     float32 (lane-dense output tile)
    """
    idx = idx_ref[...]                                           # (1, blk)
    r_pad = table_t_ref.shape[1]
    blk = idx.shape[1]
    row = jax.lax.broadcasted_iota(jnp.int32, (r_pad, blk), 0)   # relative-distance id
    # Exactly one 1.0 per valid column; padded table cols are zero and never hit.
    onehot = (row == idx).astype(jnp.float32)                    # (R_pad, blk)
    out_ref[...] = jnp.dot(table_t_ref[...], onehot,
                           preferred_element_type=jnp.float32)   # (H_pad, blk)


def _choose_block(ll, block_ll):
    """Pick the L*L tile: multiple of 128, capped, and >=2 balanced tiles on v7x
    when the problem is big enough to be worth splitting across TensorCores."""
    block_ll = max(128, _round_up(block_ll, 128))
    if ll <= 1024:
        return _round_up(ll, 128)                # single tile; launch-bound anyway
    n_tiles = max(2, _cdiv(ll, block_ll))        # >= 2 roughly-equal tiles
    return min(block_ll, _round_up(_cdiv(ll, n_tiles), 128))


def relative_position_bias_2d(table, relative_position_index, window_size, *, block_ll=2048):
    """Forward pass: returns (num_heads, L, L) float32, L = Wh*Ww + 1.

    `table` is the (num_relative_distance, num_heads) parameter,
    `relative_position_index` the (L, L) int buffer from the module's __init__.
    """
    Wh, Ww = window_size
    L = Wh * Ww + 1
    LL = L * L
    num_rel, num_heads = table.shape

    # Lane-dense flattened index: (1, L*L).
    idx_flat = relative_position_index.reshape(1, LL).astype(jnp.int32)

    # Pre-transpose the (tiny) table to (H, R); pad H to a multiple of 8 (sublane)
    # and R to a multiple of 8.  Padded entries are zero and never selected.
    h_pad = _round_up(num_heads, 8)
    r_pad = _round_up(num_rel, 8)
    table_t = jnp.transpose(table).astype(jnp.float32)            # (H, R)
    table_t = jnp.pad(table_t, ((0, h_pad - num_heads), (0, r_pad - num_rel)))

    # Tile the L*L axis.  With block_ll<=2048 the f32 one-hot temp stays <= ~8 MB
    # even for 16x16 windows, inside every generation's default scoped-VMEM limit.
    blk = _choose_block(LL, block_ll)
    grid = (pl.cdiv(LL, blk),)

    gathered = pl.pallas_call(
        _gather_bias_kernel,
        out_shape=jax.ShapeDtypeStruct((h_pad, LL), jnp.float32),
        grid_spec=pltpu.PrefetchScalarGridSpec(
            num_scalar_prefetch=0,
            grid=grid,
            in_specs=[
                pl.BlockSpec((1, blk), lambda i: (0, i)),               # idx tile (lane-dense)
                pl.BlockSpec((h_pad, r_pad), lambda i: (0, 0)),         # full table, resident
            ],
            out_specs=pl.BlockSpec((h_pad, blk), lambda i: (0, i)),     # lane-dense output tile
        ),
        compiler_params=pltpu.CompilerParams(
            # v7x: shard the L*L tiles across both TensorCores; no-op on v5e/v6e.
            dimension_semantics=("parallel",),
        ),
    )(idx_flat, table_t)

    # Drop padded heads; (H, L*L) -> (H, L, L) is a free reshape and reproduces
    # the PyTorch `permute(2, 0, 1).contiguous()` layout.
    return gathered[:num_heads].reshape(num_heads, L, L)


def _run_case(window_size, num_heads, key):
    """Build module state, run the kernel, check bit-exactness vs a numpy reference."""
    rel_idx_np, num_rel = _build_relative_position_index(window_size)
    assert rel_idx_np.max() < num_rel and rel_idx_np.min() >= 0  # guard padded table rows

    relative_position_index = jnp.asarray(rel_idx_np)
    # Module inits the table to zeros; use random values so the gather is exercised.
    table = jax.random.normal(key, (num_rel, num_heads), dtype=jnp.float32)

    out = relative_position_bias_2d(table, relative_position_index, window_size)
    out = jax.block_until_ready(out)

    L = window_size[0] * window_size[1] + 1
    table_np = np.asarray(table)
    ref = table_np[rel_idx_np.reshape(-1)].reshape(L, L, num_heads).transpose(2, 0, 1)

    assert out.shape == (num_heads, L, L), out.shape
    np.testing.assert_allclose(np.asarray(out), ref, rtol=0, atol=0)


if __name__ == "__main__":
    key = jax.random.PRNGKey(0)
    k1, k2 = jax.random.split(key)

    # Case 1: small window, single tile, num_heads already a multiple of 8.
    _run_case(window_size=(4, 4), num_heads=8, key=k1)

    # Case 2: multi-tile path with a non-128-multiple L*L (L*L = 2500 -> two
    # balanced tiles, partial last tile) and num_heads=12 (head padding to 16).
    _run_case(window_size=(7, 7), num_heads=12, key=k2)

    print("KERNEL_OK")
</pallas_src>

<mosaic_0001>
module attributes {stable_mosaic.version = 11 : i64} {
  func.func @_gather_bias_kernel(%arg0: i32, %arg1: memref<1x384xi32, #tpu.memory_space<vmem>>, %arg2: memref<8x56xf32, #tpu.memory_space<vmem>>, %arg3: memref<8x384xf32, #tpu.memory_space<vmem>>) attributes {dimension_semantics = [#tpu.dimension_semantics<parallel>], iteration_bounds = array<i64: 1>, scalar_prefetch = 0 : i64, scratch_operands = 0 : i64, tpu.core_type = #tpu.core_type<tc>, window_params = [{transform_indices = @transform_0, window_bounds = array<i64: 1, 384>}, {pipeline_mode = #tpu.pipeline_mode<synchronous>, transform_indices = @transform_1, window_bounds = array<i64: 8, 56>}, {transform_indices = @transform_2, window_bounds = array<i64: 8, 384>}]} {
    %c0 = arith.constant 0 : index
    %c0_0 = arith.constant 0 : index
    %0 = vector.load %arg1[%c0, %c0_0] : memref<1x384xi32, #tpu.memory_space<vmem>>, vector<1x384xi32>
    %1 = tpu.iota {dimensions = array<i32: 0>} : vector<56x384xi32>
    %2 = vector.broadcast %0 : vector<1x384xi32> to vector<56x384xi32>
    %3 = arith.cmpi eq, %1, %2 : vector<56x384xi32>
    %4 = arith.extui %3 : vector<56x384xi1> to vector<56x384xi32>
    %5 = arith.sitofp %4 : vector<56x384xi32> to vector<56x384xf32>
    %c0_1 = arith.constant 0 : index
    %c0_2 = arith.constant 0 : index
    %6 = vector.load %arg2[%c0_1, %c0_2] : memref<8x56xf32, #tpu.memory_space<vmem>>, vector<8x56xf32>
    %cst = arith.constant dense<0.000000e+00> : vector<8x384xf32>
    %7 = tpu.matmul %6, %5, %cst {dimension_numbers = #tpu.dot_dimension_numbers<[1], [0], [0], [1], [0, 0, 1, 1], [], []>} : vector<8x56xf32>, vector<56x384xf32>, vector<8x384xf32> -> vector<8x384xf32>
    %c0_3 = arith.constant 0 : index
    %c0_4 = arith.constant 0 : index
    %8 = vector.load %arg3[%c0_3, %c0_4] : memref<8x384xf32, #tpu.memory_space<vmem>>, vector<8x384xf32>
    tpu.vector_store %arg3[%c0_3, %c0_4], %7 {strides = array<i32>} : memref<8x384xf32, #tpu.memory_space<vmem>>, vector<8x384xf32>,
    return
  }
  func.func @transform_0(%arg0: i32) -> (i32, i32) {
    %c0_i32 = arith.constant 0 : i32
    %c0_i32_0 = arith.constant 0 : i32
    return %c0_i32, %arg0 : i32, i32
  }
  func.func @transform_1(%arg0: i32) -> (i32, i32) {
    %c0_i32 = arith.constant 0 : i32
    %c0_i32_0 = arith.constant 0 : i32
    %c0_i32_1 = arith.constant 0 : i32
    return %c0_i32, %c0_i32_0 : i32, i32
  }
  func.func @transform_2(%arg0: i32) -> (i32, i32) {
    %c0_i32 = arith.constant 0 : i32
    %c0_i32_0 = arith.constant 0 : i32
    return %c0_i32, %arg0 : i32, i32
  }
}

</mosaic_0001>

<llo_original>
// kernel: tpu_custom_call.1
$region0: #{tpu_custom_call.1}
  #allocation0 [shape = 'u32[]', space=smem, size = 0x4, offset = 0x4, fixed_abs, tag = 'smem constant byte address 0x4 - core index']
  #allocation1 [shape = 'u32[144,128]{1,0:T(1,128)}', space=vmem, size = 0x12000, scoped, tag = 'internal scratch']
  %s0 = inlined_call_operand.hbm [shape: s32[1,289], index: 0, kind: input, shape index: {}]
  %s1 = inlined_call_operand.hbm [shape: f32[8,56], index: 1, kind: input, shape index: {}]
  %s2 = inlined_call_operand.hbm [shape: f32[8,289], index: 2, kind: output, shape index: {}]
  %s3 = sld [smem:[#allocation0]]
  $region26: #{tpu_custom_call.1} parent=0
    _
  %s5 = ssub.s32 1, %s3
  %s6 = scalar_select 0, %s5, %s3
  $region1: #{tpu_custom_call.1} parent=0
    #allocation2 [shape = 'u8[1536]{0}', space=vmem, size = 0x800, scoped, tag = 'input window, operand 0, single buffered']
    #allocation3 [shape = 's32[1]{0}', space=sflag, size = 0x4, scoped, tag = 'scoped memory for tpu_custom_call.1']
    #allocation4 [shape = 's32[1]{0}', space=sflag, size = 0x4, scoped, tag = 'scoped memory for tpu_custom_call.1']
    #allocation5 [shape = 'u8[4096]{0}', space=vmem, size = 0x1000, scoped, tag = 'input window, operand 1, single buffered']
    #allocation6 [shape = 's32[1]{0}', space=sflag, size = 0x4, scoped, tag = 'scoped memory for tpu_custom_call.1']
    #allocation7 [shape = 'u8[12288]{0}', space=vmem, size = 0x3000, scoped, tag = 'output window, operand 0, single buffered']
    %7 = vsyncpa [#allocation3], 0
    %8 = vsyncpa [#allocation6], 0
    %9 = vsyncpa [#allocation4], 0
    // Predicated region
    $region2: #{tpu_custom_call.1} parent=1 // pred_check
      _
    $region3: #{tpu_custom_call.1} parent=1 // pred_check_branch
      %11 = sbr.rel (0) target = $region5
    $region4: #{tpu_custom_call.1} parent=1 // pred_region
      %s13 = ssub.s32 48, 48
      %14 = vsyncadd [#allocation3], %s13
      %s16 = sshll.u32 [#allocation2], 4
      %s17 = int_to_ptr.vmem [resolvable:$true] %s16
      %19 = dma.hbm_to_vmem [thread:$0]  %s0, 48, %s17, [#allocation3]
    $region5: #{tpu_custom_call.1} parent=1 // pred_fallthru
      _
    // Predicated region
    $region6: #{tpu_custom_call.1} parent=1 // pred_check
      _
    $region7: #{tpu_custom_call.1} parent=1 // pred_check_branch
      %21 = sbr.rel (0) target = $region9
    $region8: #{tpu_custom_call.1} parent=1 // pred_region
      %s23 = ssub.s32 128, 128
      %24 = vsyncadd [#allocation6], %s23
      %s26 = sshll.u32 [#allocation5], 4
      %s27 = int_to_ptr.vmem [resolvable:$true] %s26
      %29 = dma.hbm_to_vmem [thread:$0]  %s1, 128, %s27, [#allocation6]
    $region9: #{tpu_custom_call.1} parent=1 // pred_fallthru
      _
    // Predicated region
    $region10: #{tpu_custom_call.1} parent=1 // pred_check
      _
    $region11: #{tpu_custom_call.1} parent=1 // pred_check_branch
      %31 = sbr.rel (0) target = $region13
    $region12: #{tpu_custom_call.1} parent=1 // pred_region
      %32 = dma.done [#allocation3], 48
    $region13: #{tpu_custom_call.1} parent=1 // pred_fallthru
      _
    // Predicated region
    $region14: #{tpu_custom_call.1} parent=1 // pred_check
      _
    $region15: #{tpu_custom_call.1} parent=1 // pred_check_branch
      %34 = sbr.rel (0) target = $region17
    $region16: #{tpu_custom_call.1} parent=1 // pred_region
      %35 = dma.done [#allocation6], 128
    $region17: #{tpu_custom_call.1} parent=1 // pred_fallthru
      _
    %v36 = vld [vmem:[#allocation2] sm:$0x7]
    %v37 = vlaneseq
    %v38 = vshrl.u32 %v37, 7
    %v39 = vadd.s32 %v38, 8
    %v40 = vadd.s32 %v38, 16
    %v41 = vadd.s32 %v38, 24
    %v42 = vadd.s32 %v38, 32
    %v43 = vadd.s32 %v38, 40
    %v44 = vadd.s32 %v38, 48
    %v45 = vlaneseq
    %v46 = vshrl.u32 %v45, 7
    %v47 = vsub.s32 0, %v46
    %v48 = vrot.slane %v36, %v47
    %v49 = vlaneseq
    %v50 = vshrl.u32 %v49, 7
    %v51 = vsub.s32 1, %v50
    %v52 = vrot.slane %v36, %v51
    %v53 = vlaneseq
    %v54 = vshrl.u32 %v53, 7
    %v55 = vsub.s32 2, %v54
    %v56 = vrot.slane %v36, %v55
    %vm57 = vcmp.eq.s32.totalorder %v38, %v48
    %vm58 = vcmp.eq.s32.totalorder %v38, %v52
    %vm59 = vcmp.eq.s32.totalorder %v38, %v56
    %vm60 = vcmp.eq.s32.totalorder %v39, %v48
    %vm61 = vcmp.eq.s32.totalorder %v39, %v52
    %vm62 = vcmp.eq.s32.totalorder %v39, %v56
    %vm63 = vcmp.eq.s32.totalorder %v40, %v48
    %vm64 = vcmp.eq.s32.totalorder %v40, %v52
    %vm65 = vcmp.eq.s32.totalorder %v40, %v56
    %vm66 = vcmp.eq.s32.totalorder %v41, %v48
    %vm67 = vcmp.eq.s32.totalorder %v41, %v52
    %vm68 = vcmp.eq.s32.totalorder %v41, %v56
    %vm69 = vcmp.eq.s32.totalorder %v42, %v48
    %vm70 = vcmp.eq.s32.totalorder %v42, %v52
    %vm71 = vcmp.eq.s32.totalorder %v42, %v56
    %vm72 = vcmp.eq.s32.totalorder %v43, %v48
    %vm73 = vcmp.eq.s32.totalorder %v43, %v52
    %vm74 = vcmp.eq.s32.totalorder %v43, %v56
    %vm75 = vcmp.eq.s32.totalorder %v44, %v48
    %vm76 = vcmp.eq.s32.totalorder %v44, %v52
    %vm77 = vcmp.eq.s32.totalorder %v44, %v56
    %v78 = vsel %vm57, 1, 0
    %v79 = vsel %vm58, 1, 0
    %v80 = vsel %vm59, 1, 0
    %v81 = vsel %vm60, 1, 0
    %v82 = vsel %vm61, 1, 0
    %v83 = vsel %vm62, 1, 0
    %v84 = vsel %vm63, 1, 0
    %v85 = vsel %vm64, 1, 0
    %v86 = vsel %vm65, 1, 0
    %v87 = vsel %vm66, 1, 0
    %v88 = vsel %vm67, 1, 0
    %v89 = vsel %vm68, 1, 0
    %v90 = vsel %vm69, 1, 0
    %v91 = vsel %vm70, 1, 0
    %v92 = vsel %vm71, 1, 0
    %v93 = vsel %vm72, 1, 0
    %v94 = vsel %vm73, 1, 0
    %v95 = vsel %vm74, 1, 0
    %v96 = vsel %vm75, 1, 0
    %v97 = vsel %vm76, 1, 0
    %v98 = vsel %vm77, 1, 0
    %v99 = vcvt.s32.f32 %v78
    %v100 = vcvt.s32.f32 %v79
    %v101 = vcvt.s32.f32 %v80
    %v102 = vcvt.s32.f32 %v81
    %v103 = vcvt.s32.f32 %v82
    %v104 = vcvt.s32.f32 %v83
    %v105 = vcvt.s32.f32 %v84
    %v106 = vcvt.s32.f32 %v85
    %v107 = vcvt.s32.f32 %v86
    %v108 = vcvt.s32.f32 %v87
    %v109 = vcvt.s32.f32 %v88
    %v110 = vcvt.s32.f32 %v89
    %v111 = vcvt.s32.f32 %v90
    %v112 = vcvt.s32.f32 %v91
    %v113 = vcvt.s32.f32 %v92
    %v114 = vcvt.s32.f32 %v93
    %v115 = vcvt.s32.f32 %v94
    %v116 = vcvt.s32.f32 %v95
    %v117 = vcvt.s32.f32 %v96
    %v118 = vcvt.s32.f32 %v97
    %v119 = vcvt.s32.f32 %v98
    %v120 = vld [vmem:[#allocation5] sm:$0xff]
    %vm121 = vcmask 457728
    %v123 = vsel %vm121, %v120, 0
    %125 = vmatprep.subr.mxu0 %v100
    %126 = vmatpush1.msra.mxu0 %v99
    %127 = vmatprep.subr.mxu0 %v103
    %128 = vmatpush1.msra.mxu0 %v102
    %129 = vmatprep.subr.mxu0 %v106
    %130 = vmatpush1.msra.mxu0 %v105
    %131 = vmatprep.subr.mxu0 %v109
    %132 = vmatpush1.msra.mxu0 %v108
    %133 = vmatprep.subr.mxu0 %v112
    %134 = vmatpush1.msra.mxu0 %v111
    %135 = vmatprep.subr.mxu0 %v115
    %136 = vmatpush1.msra.mxu0 %v114
    %137 = vmatprep.subr.mxu0 %v118
    %138 = vmatpush1.msra.mxu0 %v117
    %139 = vmatprep.subr.mxu0 0.0
    %140 = vmatpush1.msra.mxu0 0.0
    %141 = vmatprep.subr.mxu0 0.0
    %142 = vmatpush1.msra.mxu0 0.0
    %143 = vmatprep.subr.mxu0 0.0
    %144 = vmatpush1.msra.mxu0 0.0
    %145 = vmatprep.subr.mxu0 0.0
    %146 = vmatpush1.msra.mxu0 0.0
    %147 = vmatprep.subr.mxu0 0.0
    %148 = vmatpush1.msra.mxu0 0.0
    %149 = vmatprep.subr.mxu0 0.0
    %150 = vmatpush1.msra.mxu0 0.0
    %151 = vmatprep.subr.mxu0 0.0
    %152 = vmatpush1.msra.mxu0 0.0
    %153 = vmatprep.subr.mxu0 0.0
    %154 = vmatpush1.msra.mxu0 0.0
    %155 = vmatprep.subr.mxu0 0.0
    %156 = vmatpush1.msra.mxu0 0.0
    %157 = vmatprep.subr.mxu0 0.0
    %158 = vmatpush1.msra.mxu0 0.0
    %159 = vmatprep.subr.mxu0 0.0
    %160 = vmatpush1.msra.mxu0 0.0
    %161 = vmatprep.subr.mxu0 0.0
    %162 = vmatpush1.msra.mxu0 0.0
    %163 = vmatprep.subr.mxu0 0.0
    %164 = vmatpush1.msra.mxu0 0.0
    %165 = vmatprep.subr.mxu0 0.0
    %166 = vmatpush1.msra.mxu0 0.0
    %167 = vmatprep.subr.mxu0 0.0
    %168 = vmatpush1.msra.mxu0 0.0
    %169 = vmatprep.subr.mxu0 0.0
    %170 = vmatpush1.msra.mxu0 0.0
    %171 = vmatprep.subr.mxu0 0.0
    %172 = vmatpush1.msra.mxu0 0.0
    %173 = vmatprep.subr.mxu0 0.0
    %174 = vmatpush1.msra.mxu0 0.0
    %175 = vmatprep.subr.mxu0 0.0
    %176 = vmatpush1.msra.mxu0 0.0
    %177 = vmatprep.subr.mxu0 0.0
    %178 = vmatpush1.msra.mxu0 0.0
    %179 = vmatprep.subr.mxu0 0.0
    %180 = vmatpush1.msra.mxu0 0.0
    %181 = vmatprep.subr.mxu0 0.0
    %182 = vmatpush1.msra.mxu0 0.0
    %183 = vmatprep.subr.mxu0 0.0
    %184 = vmatpush1.msra.mxu0 0.0
    %185 = vmatprep.subr.mxu0 0.0
    %186 = vmatpush1.msra.mxu0 0.0
    %187 = vmatprep.subr.mxu0 0.0
    %188 = vmatpush1.msra.mxu0 0.0
    %189 = vmatprep.mubr.f32.mxu0 0.0
    %190 = vmatmul.mubr.f32.gmra.mrb[0].mxu0 %v123
    %v191 = vpop.f32.mrb[0].mxu0
    %v192 = vadd.f32 0.0, %v191
    %v193 = vpop.f32.mrb[0].mxu0
    %v194 = vadd.f32 0.0, %v193
    %195 = vdwg.mxu0
    %196 = vmatprep.subr.mxu0 0.0
    %197 = vmatpush1.msra.mxu0 %v101
    %198 = vmatprep.subr.mxu0 0.0
    %199 = vmatpush1.msra.mxu0 %v104
    %200 = vmatprep.subr.mxu0 0.0
    %201 = vmatpush1.msra.mxu0 %v107
    %202 = vmatprep.subr.mxu0 0.0
    %203 = vmatpush1.msra.mxu0 %v110
    %204 = vmatprep.subr.mxu0 0.0
    %205 = vmatpush1.msra.mxu0 %v113
    %206 = vmatprep.subr.mxu0 0.0
    %207 = vmatpush1.msra.mxu0 %v116
    %208 = vmatprep.subr.mxu0 0.0
    %209 = vmatpush1.msra.mxu0 %v119
    %210 = vmatprep.subr.mxu0 0.0
    %211 = vmatpush1.msra.mxu0 0.0
    %212 = vmatprep.subr.mxu0 0.0
    %213 = vmatpush1.msra.mxu0 0.0
    %214 = vmatprep.subr.mxu0 0.0
    %215 = vmatpush1.msra.mxu0 0.0
    %216 = vmatprep.subr.mxu0 0.0
    %217 = vmatpush1.msra.mxu0 0.0
    %218 = vmatprep.subr.mxu0 0.0
    %219 = vmatpush1.msra.mxu0 0.0
    %220 = vmatprep.subr.mxu0 0.0
    %221 = vmatpush1.msra.mxu0 0.0
    %222 = vmatprep.subr.mxu0 0.0
    %223 = vmatpush1.msra.mxu0 0.0
    %224 = vmatprep.subr.mxu0 0.0
    %225 = vmatpush1.msra.mxu0 0.0
    %226 = vmatprep.subr.mxu0 0.0
    %227 = vmatpush1.msra.mxu0 0.0
    %228 = vmatprep.subr.mxu0 0.0
    %229 = vmatpush1.msra.mxu0 0.0
    %230 = vmatprep.subr.mxu0 0.0
    %231 = vmatpush1.msra.mxu0 0.0
    %232 = vmatprep.subr.mxu0 0.0
    %233 = vmatpush1.msra.mxu0 0.0
    %234 = vmatprep.subr.mxu0 0.0
    %235 = vmatpush1.msra.mxu0 0.0
    %236 = vmatprep.subr.mxu0 0.0
    %237 = vmatpush1.msra.mxu0 0.0
    %238 = vmatprep.subr.mxu0 0.0
    %239 = vmatpush1.msra.mxu0 0.0
    %240 = vmatprep.subr.mxu0 0.0
    %241 = vmatpush1.msra.mxu0 0.0
    %242 = vmatprep.subr.mxu0 0.0
    %243 = vmatpush1.msra.mxu0 0.0
    %244 = vmatprep.subr.mxu0 0.0
    %245 = vmatpush1.msra.mxu0 0.0
    %246 = vmatprep.subr.mxu0 0.0
    %247 = vmatpush1.msra.mxu0 0.0
    %248 = vmatprep.subr.mxu0 0.0
    %249 = vmatpush1.msra.mxu0 0.0
    %250 = vmatprep.subr.mxu0 0.0
    %251 = vmatpush1.msra.mxu0 0.0
    %252 = vmatprep.subr.mxu0 0.0
    %253 = vmatpush1.msra.mxu0 0.0
    %254 = vmatprep.subr.mxu0 0.0
    %255 = vmatpush1.msra.mxu0 0.0
    %256 = vmatprep.subr.mxu0 0.0
    %257 = vmatpush1.msra.mxu0 0.0
    %258 = vmatprep.subr.mxu0 0.0
    %259 = vmatpush1.msra.mxu0 0.0
    %260 = vmatprep.mubr.f32.mxu0 0.0
    %261 = vmatmul.mubr.f32.gmra.mrb[0].mxu0 %v123
    %v262 = vpop.f32.mrb[0].mxu0
    %v263 = vadd.f32 0.0, %v262
    %v264 = vpop.f32.mrb[0].mxu0
    %265 = vdwg.mxu0
    %266 = vst [vmem:[#allocation7] sm:$0xff] %v192
    %267 = vst [vmem:[#allocation7 + $0x8] sm:$0xff] %v194
    %268 = vst [vmem:[#allocation7 + $0x10] sm:$0xff] %v263
    // Predicated region
    $region18: #{tpu_custom_call.1} parent=1 // pred_check
      _
    $region19: #{tpu_custom_call.1} parent=1 // pred_check_branch
      %270 = sbr.rel (0) target = $region21
    $region20: #{tpu_custom_call.1} parent=1 // pred_region
      %s272 = ssub.s32 384, 384
      %273 = vsyncadd [#allocation4], %s272
      %s275 = sshll.u32 [#allocation7], 4
      %s276 = int_to_ptr.vmem [resolvable:$true] %s275
      %278 = dma.vmem_to_hbm [thread:$0]  %s276, 384, %s2, [#allocation4]
    $region21: #{tpu_custom_call.1} parent=1 // pred_fallthru
      _
    // Predicated region
    $region22: #{tpu_custom_call.1} parent=1 // pred_check
      _
    $region23: #{tpu_custom_call.1} parent=1 // pred_check_branch
      %280 = sbr.rel (0) target = $region25
    $region24: #{tpu_custom_call.1} parent=1 // pred_region
      %281 = dma.done [#allocation4], 384
    $region25: #{tpu_custom_call.1} parent=1 // pred_fallthru
      _
    %282 = vsyncpa [#allocation3], 1
    %283 = vsyncpa [#allocation6], 1
    %284 = vsyncpa [#allocation4], 1

</llo_original>
